<compile_context>
chip_gen: v7x
topology: tpu7x:2x2x1
jax: 0.10.0
libtpu: 0.0.40
codegen_flags: <defaults>
</compile_context>

<pallas_src>
import functools

import jax
import jax.numpy as jnp
from jax.experimental import pallas as pl
from jax.experimental.pallas import tpu as pltpu

_EPS = 1e-5  # PyTorch BatchNorm2d default eps


def _conv3x3_im2col(x_cm, wmat, masks, width):
    """3x3 stride-1 pad-1 conv in channel-major flat layout.

    x_cm:  (Cp, M) f32, M = N*H*W flattened (w fastest).
    wmat:  (Cp, 9*Cp) f32 im2col weights (tap-major, in-channel-minor).
    masks: (9, M) f32 per-tap validity masks (zero where the tap crosses an
           image/row border, i.e. the conv's zero padding).
    """
    cp, m = x_cm.shape
    planes = []
    for kh in range(3):
        for kw in range(3):
            t = kh * 3 + kw
            delta = (kh - 1) * width + (kw - 1)
            if delta == 0:
                shifted = x_cm
            else:
                # shifted[:, i] = x_cm[:, i + delta]; wraparound gets masked.
                shifted = pltpu.roll(x_cm, shift=(-delta) % m, axis=1)
            planes.append(shifted * masks[t:t + 1, :])
    patch = jnp.concatenate(planes, axis=0)                 # (9*Cp, M)
    return jnp.dot(wmat, patch, preferred_element_type=jnp.float32)


def _bn_scale_shift(y, gamma, beta):
    """Fold training-mode BN (biased batch stats over the lane axis) into a
    per-channel scale/shift: bn(y) == y * scale + shift."""
    m = y.shape[1]
    s1 = jnp.sum(y, axis=1, keepdims=True)                  # (Cp, 1)
    s2 = jnp.sum(y * y, axis=1, keepdims=True)              # (Cp, 1)
    mean = s1 * (1.0 / m)
    var = s2 * (1.0 / m) - mean * mean
    scale = gamma * jax.lax.rsqrt(var + _EPS)
    shift = beta - mean * scale
    return scale, shift


def basic_block_kernel(x_ref, masks_ref, w1_ref, g1_ref, b1_ref,
                       w2_ref, g2_ref, b2_ref, out_ref, *, width):
    x = x_ref[...]            # (Cp, M) f32, resident; read exactly once
    masks = masks_ref[...]    # (9, M)  f32

    # conv1 -> bn1 -> relu (BN folded into one fused scale/shift + relu sweep)
    y1 = _conv3x3_im2col(x, w1_ref[...], masks, width)
    s1, t1 = _bn_scale_shift(y1, g1_ref[...], b1_ref[...])
    h1 = jnp.maximum(y1 * s1 + t1, 0.0)

    # conv2 -> bn2 -> (+ identity shortcut) -> relu: single fused epilogue
    y2 = _conv3x3_im2col(h1, w2_ref[...], masks, width)
    s2, t2 = _bn_scale_shift(y2, g2_ref[...], b2_ref[...])
    out_ref[...] = jnp.maximum(y2 * s2 + t2 + x, 0.0).astype(out_ref.dtype)


def basic_block(x_nchw, w1_oihw, g1, b1, w2_oihw, g2, b2):
    n, c, h, w = x_nchw.shape
    assert w1_oihw.shape[0] == c and w2_oihw.shape[0] == c, (
        "identity shortcut requires stride == 1 and in_planes == planes")
    # TODO(synk): option-A strided zero-padded shortcut (stride != 1) not implemented.

    m = n * h * w
    cp = max(8, ((c + 7) // 8) * 8)          # pad channels to a sublane multiple
    f32 = jnp.float32

    # ---------- layout plumbing (all outside the kernel, handled by XLA) ----------
    # activations: NCHW -> channel-major flat (Cp, M), M on the lane axis
    x_cm = jnp.transpose(x_nchw, (1, 0, 2, 3)).reshape(c, m).astype(f32)
    x_cm = jnp.pad(x_cm, ((0, cp - c), (0, 0)))

    # im2col weight matrices: wmat[co, tap*Cp + ci] = w[co, ci, kh, kw]
    def to_wmat(w_oihw):
        wt = jnp.transpose(w_oihw, (0, 2, 3, 1)).reshape(c, 9, c).astype(f32)
        return jnp.zeros((cp, 9, cp), f32).at[:c, :, :c].set(wt).reshape(cp, 9 * cp)

    w1mat, w2mat = to_wmat(w1_oihw), to_wmat(w2_oihw)

    # per-tap border masks (implement the conv's zero padding under the rolls)
    midx = jnp.arange(m, dtype=jnp.int32)
    col = midx % w
    row = (midx // w) % h
    tap_masks = []
    for kh in range(3):
        for kw in range(3):
            dh, dw = kh - 1, kw - 1
            valid = ((row + dh >= 0) & (row + dh < h)
                     & (col + dw >= 0) & (col + dw < w))
            tap_masks.append(valid)
    masks = jnp.stack(tap_masks).astype(f32)                 # (9, M)

    def pad_param(p):
        return jnp.pad(p.reshape(c, 1).astype(f32), ((0, cp - c), (0, 0)))

    g1p, b1p, g2p, b2p = map(pad_param, (g1, b1, g2, b2))

    # ---------- fused kernel: single invocation, whole problem resident in VMEM ----------
    # TODO(synk): at production ResNet sizes this needs a tiled multi-phase grid
    # (per-channel sum/sumsq accumulator pass + normalize pass with row halos)
    # so BN batch statistics stay global; not needed at this test size.
    vmem = pl.BlockSpec(memory_space=pltpu.MemorySpace.VMEM)
    flops = 2 * (2 * m * (9 * cp) * cp) + 12 * cp * m
    bytes_accessed = 4 * (2 * cp * m + 9 * m + 2 * cp * 9 * cp + 4 * cp)
    out_cm = pl.pallas_call(
        functools.partial(basic_block_kernel, width=w),
        out_shape=jax.ShapeDtypeStruct((cp, m), f32),
        in_specs=[vmem] * 8,
        out_specs=vmem,
        compiler_params=pltpu.CompilerParams(vmem_limit_bytes=32 * 1024 * 1024),
        cost_estimate=pl.CostEstimate(flops=flops, transcendentals=2 * cp,
                                      bytes_accessed=bytes_accessed),
    )(x_cm, masks, w1mat, g1p, b1p, w2mat, g2p, b2p)

    # back to NCHW, dropping the channel padding
    out = out_cm[:c].reshape(c, n, h, w)
    return jnp.transpose(out, (1, 0, 2, 3)).astype(x_nchw.dtype)


def _reference(x, w1, g1, b1, w2, g2, b2):
    # pure-JAX reference of the PyTorch forward (NCHW / OIHW).
    def conv(x, w):
        return jax.lax.conv_general_dilated(
            x, w, window_strides=(1, 1), padding=((1, 1), (1, 1)),
            dimension_numbers=("NCHW", "OIHW", "NCHW"))

    def bn(y, g, b):
        mean = jnp.mean(y, axis=(0, 2, 3), keepdims=True)
        var = jnp.mean((y - mean) ** 2, axis=(0, 2, 3), keepdims=True)
        return ((y - mean) * jax.lax.rsqrt(var + _EPS)
                * g.reshape(1, -1, 1, 1) + b.reshape(1, -1, 1, 1))

    out = jax.nn.relu(bn(conv(x, w1), g1, b1))
    out = bn(conv(out, w2), g2, b2)
    return jax.nn.relu(out + x)


if __name__ == "__main__":
    N, C, H, W = 2, 4, 16, 16            # in_planes = planes = 4, stride = 1
    key = jax.random.PRNGKey(0)
    kx, k1, k2, kg1, kb1, kg2, kb2 = jax.random.split(key, 7)

    x = jax.random.normal(kx, (N, C, H, W), dtype=jnp.float32)
    w1 = 0.1 * jax.random.normal(k1, (C, C, 3, 3), dtype=jnp.float32)   # OIHW
    w2 = 0.1 * jax.random.normal(k2, (C, C, 3, 3), dtype=jnp.float32)   # OIHW
    g1 = 1.0 + 0.1 * jax.random.normal(kg1, (C,), dtype=jnp.float32)
    b1 = 0.05 * jax.random.normal(kb1, (C,), dtype=jnp.float32)
    g2 = 1.0 + 0.1 * jax.random.normal(kg2, (C,), dtype=jnp.float32)
    b2 = 0.05 * jax.random.normal(kb2, (C,), dtype=jnp.float32)

    out = jax.block_until_ready(basic_block(x, w1, g1, b1, w2, g2, b2))

    ref = _reference(x, w1, g1, b1, w2, g2, b2)
    assert out.shape == (N, C, H, W)
    err = float(jnp.max(jnp.abs(out - ref)))
    assert jnp.allclose(out, ref, atol=2e-3, rtol=2e-3), "max abs diff %e" % err

    print("KERNEL_OK")
</pallas_src>

<mosaic_0001>
module attributes {stable_mosaic.version = 11 : i64} {
  func.func @basic_block_kernel(%arg0: memref<8x512xf32, #tpu.memory_space<vmem>>, %arg1: memref<9x512xf32, #tpu.memory_space<vmem>>, %arg2: memref<8x72xf32, #tpu.memory_space<vmem>>, %arg3: memref<8x1xf32, #tpu.memory_space<vmem>>, %arg4: memref<8x1xf32, #tpu.memory_space<vmem>>, %arg5: memref<8x72xf32, #tpu.memory_space<vmem>>, %arg6: memref<8x1xf32, #tpu.memory_space<vmem>>, %arg7: memref<8x1xf32, #tpu.memory_space<vmem>>, %arg8: memref<8x512xf32, #tpu.memory_space<vmem>>) attributes {dimension_semantics = [], scalar_prefetch = 0 : i64, scratch_operands = 0 : i64, tpu.core_type = #tpu.core_type<tc>} {
    %c0 = arith.constant 0 : index
    %c0_0 = arith.constant 0 : index
    %0 = vector.load %arg0[%c0, %c0_0] : memref<8x512xf32, #tpu.memory_space<vmem>>, vector<8x512xf32>
    %c0_1 = arith.constant 0 : index
    %c0_2 = arith.constant 0 : index
    %1 = vector.load %arg1[%c0_1, %c0_2] : memref<9x512xf32, #tpu.memory_space<vmem>>, vector<9x512xf32>
    %c0_3 = arith.constant 0 : index
    %c0_4 = arith.constant 0 : index
    %2 = vector.load %arg2[%c0_3, %c0_4] : memref<8x72xf32, #tpu.memory_space<vmem>>, vector<8x72xf32>
    %c17_i32 = arith.constant 17 : i32
    %3 = tpu.dynamic_rotate %0 by %c17_i32 dim 1 : vector<8x512xf32>, i32 -> vector<8x512xf32>
    %4 = vector.extract_strided_slice %1 {offsets = [0, 0], sizes = [1, 512], strides = [1, 1]} : vector<9x512xf32> to vector<1x512xf32>
    %5 = vector.broadcast %4 : vector<1x512xf32> to vector<8x512xf32>
    %6 = arith.mulf %3, %5 : vector<8x512xf32>
    %c16_i32 = arith.constant 16 : i32
    %7 = tpu.dynamic_rotate %0 by %c16_i32 dim 1 : vector<8x512xf32>, i32 -> vector<8x512xf32>
    %8 = vector.extract_strided_slice %1 {offsets = [1, 0], sizes = [1, 512], strides = [1, 1]} : vector<9x512xf32> to vector<1x512xf32>
    %9 = vector.broadcast %8 : vector<1x512xf32> to vector<8x512xf32>
    %10 = arith.mulf %7, %9 : vector<8x512xf32>
    %c15_i32 = arith.constant 15 : i32
    %11 = tpu.dynamic_rotate %0 by %c15_i32 dim 1 : vector<8x512xf32>, i32 -> vector<8x512xf32>
    %12 = vector.extract_strided_slice %1 {offsets = [2, 0], sizes = [1, 512], strides = [1, 1]} : vector<9x512xf32> to vector<1x512xf32>
    %13 = vector.broadcast %12 : vector<1x512xf32> to vector<8x512xf32>
    %14 = arith.mulf %11, %13 : vector<8x512xf32>
    %c1_i32 = arith.constant 1 : i32
    %15 = tpu.dynamic_rotate %0 by %c1_i32 dim 1 : vector<8x512xf32>, i32 -> vector<8x512xf32>
    %16 = vector.extract_strided_slice %1 {offsets = [3, 0], sizes = [1, 512], strides = [1, 1]} : vector<9x512xf32> to vector<1x512xf32>
    %17 = vector.broadcast %16 : vector<1x512xf32> to vector<8x512xf32>
    %18 = arith.mulf %15, %17 : vector<8x512xf32>
    %19 = vector.extract_strided_slice %1 {offsets = [4, 0], sizes = [1, 512], strides = [1, 1]} : vector<9x512xf32> to vector<1x512xf32>
    %20 = vector.broadcast %19 : vector<1x512xf32> to vector<8x512xf32>
    %21 = arith.mulf %0, %20 : vector<8x512xf32>
    %c511_i32 = arith.constant 511 : i32
    %22 = tpu.dynamic_rotate %0 by %c511_i32 dim 1 : vector<8x512xf32>, i32 -> vector<8x512xf32>
    %23 = vector.extract_strided_slice %1 {offsets = [5, 0], sizes = [1, 512], strides = [1, 1]} : vector<9x512xf32> to vector<1x512xf32>
    %24 = vector.broadcast %23 : vector<1x512xf32> to vector<8x512xf32>
    %25 = arith.mulf %22, %24 : vector<8x512xf32>
    %c497_i32 = arith.constant 497 : i32
    %26 = tpu.dynamic_rotate %0 by %c497_i32 dim 1 : vector<8x512xf32>, i32 -> vector<8x512xf32>
    %27 = vector.extract_strided_slice %1 {offsets = [6, 0], sizes = [1, 512], strides = [1, 1]} : vector<9x512xf32> to vector<1x512xf32>
    %28 = vector.broadcast %27 : vector<1x512xf32> to vector<8x512xf32>
    %29 = arith.mulf %26, %28 : vector<8x512xf32>
    %c496_i32 = arith.constant 496 : i32
    %30 = tpu.dynamic_rotate %0 by %c496_i32 dim 1 : vector<8x512xf32>, i32 -> vector<8x512xf32>
    %31 = vector.extract_strided_slice %1 {offsets = [7, 0], sizes = [1, 512], strides = [1, 1]} : vector<9x512xf32> to vector<1x512xf32>
    %32 = vector.broadcast %31 : vector<1x512xf32> to vector<8x512xf32>
    %33 = arith.mulf %30, %32 : vector<8x512xf32>
    %c495_i32 = arith.constant 495 : i32
    %34 = tpu.dynamic_rotate %0 by %c495_i32 dim 1 : vector<8x512xf32>, i32 -> vector<8x512xf32>
    %35 = vector.extract_strided_slice %1 {offsets = [8, 0], sizes = [1, 512], strides = [1, 1]} : vector<9x512xf32> to vector<1x512xf32>
    %36 = vector.broadcast %35 : vector<1x512xf32> to vector<8x512xf32>
    %37 = arith.mulf %34, %36 : vector<8x512xf32>
    %38 = tpu.concatenate %6, %10, %14, %18, %21, %25, %29, %33, %37 in 0 : vector<8x512xf32>, vector<8x512xf32>, vector<8x512xf32>, vector<8x512xf32>, vector<8x512xf32>, vector<8x512xf32>, vector<8x512xf32>, vector<8x512xf32>, vector<8x512xf32> -> vector<72x512xf32>
    %cst = arith.constant dense<0.000000e+00> : vector<8x512xf32>
    %39 = tpu.matmul %2, %38, %cst {dimension_numbers = #tpu.dot_dimension_numbers<[1], [0], [0], [1], [0, 0, 1, 1], [], []>} : vector<8x72xf32>, vector<72x512xf32>, vector<8x512xf32> -> vector<8x512xf32>
    %c0_5 = arith.constant 0 : index
    %c0_6 = arith.constant 0 : index
    %40 = vector.load %arg3[%c0_5, %c0_6] : memref<8x1xf32, #tpu.memory_space<vmem>>, vector<8x1xf32>
    %c0_7 = arith.constant 0 : index
    %c0_8 = arith.constant 0 : index
    %41 = vector.load %arg4[%c0_7, %c0_8] : memref<8x1xf32, #tpu.memory_space<vmem>>, vector<8x1xf32>
    %cst_9 = arith.constant dense<0.000000e+00> : vector<8xf32>
    %42 = vector.multi_reduction <add>, %39, %cst_9 [1] : vector<8x512xf32> to vector<8xf32>
    %43 = vector.shape_cast %42 : vector<8xf32> to vector<8x1xf32>
    %44 = arith.mulf %39, %39 : vector<8x512xf32>
    %cst_10 = arith.constant dense<0.000000e+00> : vector<8xf32>
    %45 = vector.multi_reduction <add>, %44, %cst_10 [1] : vector<8x512xf32> to vector<8xf32>
    %46 = vector.shape_cast %45 : vector<8xf32> to vector<8x1xf32>
    %cst_11 = arith.constant 0.001953125 : f32
    %47 = vector.broadcast %cst_11 : f32 to vector<8x1xf32>
    %48 = arith.mulf %43, %47 : vector<8x1xf32>
    %cst_12 = arith.constant 0.001953125 : f32
    %49 = vector.broadcast %cst_12 : f32 to vector<8x1xf32>
    %50 = arith.mulf %46, %49 : vector<8x1xf32>
    %51 = arith.mulf %48, %48 : vector<8x1xf32>
    %52 = arith.subf %50, %51 : vector<8x1xf32>
    %cst_13 = arith.constant 9.99999974E-6 : f32
    %53 = vector.broadcast %cst_13 : f32 to vector<8x1xf32>
    %54 = arith.addf %52, %53 : vector<8x1xf32>
    %55 = math.rsqrt %54 : vector<8x1xf32>
    %56 = arith.mulf %40, %55 : vector<8x1xf32>
    %57 = arith.mulf %48, %56 : vector<8x1xf32>
    %58 = arith.subf %41, %57 : vector<8x1xf32>
    %59 = vector.broadcast %56 : vector<8x1xf32> to vector<8x512xf32>
    %60 = arith.mulf %39, %59 : vector<8x512xf32>
    %61 = vector.broadcast %58 : vector<8x1xf32> to vector<8x512xf32>
    %62 = arith.addf %60, %61 : vector<8x512xf32>
    %cst_14 = arith.constant 0.000000e+00 : f32
    %63 = vector.broadcast %cst_14 : f32 to vector<8x512xf32>
    %64 = arith.maximumf %62, %63 : vector<8x512xf32>
    %c0_15 = arith.constant 0 : index
    %c0_16 = arith.constant 0 : index
    %65 = vector.load %arg5[%c0_15, %c0_16] : memref<8x72xf32, #tpu.memory_space<vmem>>, vector<8x72xf32>
    %c17_i32_17 = arith.constant 17 : i32
    %66 = tpu.dynamic_rotate %64 by %c17_i32_17 dim 1 : vector<8x512xf32>, i32 -> vector<8x512xf32>
    %67 = vector.extract_strided_slice %1 {offsets = [0, 0], sizes = [1, 512], strides = [1, 1]} : vector<9x512xf32> to vector<1x512xf32>
    %68 = vector.broadcast %67 : vector<1x512xf32> to vector<8x512xf32>
    %69 = arith.mulf %66, %68 : vector<8x512xf32>
    %c16_i32_18 = arith.constant 16 : i32
    %70 = tpu.dynamic_rotate %64 by %c16_i32_18 dim 1 : vector<8x512xf32>, i32 -> vector<8x512xf32>
    %71 = vector.extract_strided_slice %1 {offsets = [1, 0], sizes = [1, 512], strides = [1, 1]} : vector<9x512xf32> to vector<1x512xf32>
    %72 = vector.broadcast %71 : vector<1x512xf32> to vector<8x512xf32>
    %73 = arith.mulf %70, %72 : vector<8x512xf32>
    %c15_i32_19 = arith.constant 15 : i32
    %74 = tpu.dynamic_rotate %64 by %c15_i32_19 dim 1 : vector<8x512xf32>, i32 -> vector<8x512xf32>
    %75 = vector.extract_strided_slice %1 {offsets = [2, 0], sizes = [1, 512], strides = [1, 1]} : vector<9x512xf32> to vector<1x512xf32>
    %76 = vector.broadcast %75 : vector<1x512xf32> to vector<8x512xf32>
    %77 = arith.mulf %74, %76 : vector<8x512xf32>
    %c1_i32_20 = arith.constant 1 : i32
    %78 = tpu.dynamic_rotate %64 by %c1_i32_20 dim 1 : vector<8x512xf32>, i32 -> vector<8x512xf32>
    %79 = vector.extract_strided_slice %1 {offsets = [3, 0], sizes = [1, 512], strides = [1, 1]} : vector<9x512xf32> to vector<1x512xf32>
    %80 = vector.broadcast %79 : vector<1x512xf32> to vector<8x512xf32>
    %81 = arith.mulf %78, %80 : vector<8x512xf32>
    %82 = vector.extract_strided_slice %1 {offsets = [4, 0], sizes = [1, 512], strides = [1, 1]} : vector<9x512xf32> to vector<1x512xf32>
    %83 = vector.broadcast %82 : vector<1x512xf32> to vector<8x512xf32>
    %84 = arith.mulf %64, %83 : vector<8x512xf32>
    %c511_i32_21 = arith.constant 511 : i32
    %85 = tpu.dynamic_rotate %64 by %c511_i32_21 dim 1 : vector<8x512xf32>, i32 -> vector<8x512xf32>
    %86 = vector.extract_strided_slice %1 {offsets = [5, 0], sizes = [1, 512], strides = [1, 1]} : vector<9x512xf32> to vector<1x512xf32>
    %87 = vector.broadcast %86 : vector<1x512xf32> to vector<8x512xf32>
    %88 = arith.mulf %85, %87 : vector<8x512xf32>
    %c497_i32_22 = arith.constant 497 : i32
    %89 = tpu.dynamic_rotate %64 by %c497_i32_22 dim 1 : vector<8x512xf32>, i32 -> vector<8x512xf32>
    %90 = vector.extract_strided_slice %1 {offsets = [6, 0], sizes = [1, 512], strides = [1, 1]} : vector<9x512xf32> to vector<1x512xf32>
    %91 = vector.broadcast %90 : vector<1x512xf32> to vector<8x512xf32>
    %92 = arith.mulf %89, %91 : vector<8x512xf32>
    %c496_i32_23 = arith.constant 496 : i32
    %93 = tpu.dynamic_rotate %64 by %c496_i32_23 dim 1 : vector<8x512xf32>, i32 -> vector<8x512xf32>
    %94 = vector.extract_strided_slice %1 {offsets = [7, 0], sizes = [1, 512], strides = [1, 1]} : vector<9x512xf32> to vector<1x512xf32>
    %95 = vector.broadcast %94 : vector<1x512xf32> to vector<8x512xf32>
    %96 = arith.mulf %93, %95 : vector<8x512xf32>
    %c495_i32_24 = arith.constant 495 : i32
    %97 = tpu.dynamic_rotate %64 by %c495_i32_24 dim 1 : vector<8x512xf32>, i32 -> vector<8x512xf32>
    %98 = vector.extract_strided_slice %1 {offsets = [8, 0], sizes = [1, 512], strides = [1, 1]} : vector<9x512xf32> to vector<1x512xf32>
    %99 = vector.broadcast %98 : vector<1x512xf32> to vector<8x512xf32>
    %100 = arith.mulf %97, %99 : vector<8x512xf32>
    %101 = tpu.concatenate %69, %73, %77, %81, %84, %88, %92, %96, %100 in 0 : vector<8x512xf32>, vector<8x512xf32>, vector<8x512xf32>, vector<8x512xf32>, vector<8x512xf32>, vector<8x512xf32>, vector<8x512xf32>, vector<8x512xf32>, vector<8x512xf32> -> vector<72x512xf32>
    %cst_25 = arith.constant dense<0.000000e+00> : vector<8x512xf32>
    %102 = tpu.matmul %65, %101, %cst_25 {dimension_numbers = #tpu.dot_dimension_numbers<[1], [0], [0], [1], [0, 0, 1, 1], [], []>} : vector<8x72xf32>, vector<72x512xf32>, vector<8x512xf32> -> vector<8x512xf32>
    %c0_26 = arith.constant 0 : index
    %c0_27 = arith.constant 0 : index
    %103 = vector.load %arg6[%c0_26, %c0_27] : memref<8x1xf32, #tpu.memory_space<vmem>>, vector<8x1xf32>
    %c0_28 = arith.constant 0 : index
    %c0_29 = arith.constant 0 : index
    %104 = vector.load %arg7[%c0_28, %c0_29] : memref<8x1xf32, #tpu.memory_space<vmem>>, vector<8x1xf32>
    %cst_30 = arith.constant dense<0.000000e+00> : vector<8xf32>
    %105 = vector.multi_reduction <add>, %102, %cst_30 [1] : vector<8x512xf32> to vector<8xf32>
    %106 = vector.shape_cast %105 : vector<8xf32> to vector<8x1xf32>
    %107 = arith.mulf %102, %102 : vector<8x512xf32>
    %cst_31 = arith.constant dense<0.000000e+00> : vector<8xf32>
    %108 = vector.multi_reduction <add>, %107, %cst_31 [1] : vector<8x512xf32> to vector<8xf32>
    %109 = vector.shape_cast %108 : vector<8xf32> to vector<8x1xf32>
    %cst_32 = arith.constant 0.001953125 : f32
    %110 = vector.broadcast %cst_32 : f32 to vector<8x1xf32>
    %111 = arith.mulf %106, %110 : vector<8x1xf32>
    %cst_33 = arith.constant 0.001953125 : f32
    %112 = vector.broadcast %cst_33 : f32 to vector<8x1xf32>
    %113 = arith.mulf %109, %112 : vector<8x1xf32>
    %114 = arith.mulf %111, %111 : vector<8x1xf32>
    %115 = arith.subf %113, %114 : vector<8x1xf32>
    %cst_34 = arith.constant 9.99999974E-6 : f32
    %116 = vector.broadcast %cst_34 : f32 to vector<8x1xf32>
    %117 = arith.addf %115, %116 : vector<8x1xf32>
    %118 = math.rsqrt %117 : vector<8x1xf32>
    %119 = arith.mulf %103, %118 : vector<8x1xf32>
    %120 = arith.mulf %111, %119 : vector<8x1xf32>
    %121 = arith.subf %104, %120 : vector<8x1xf32>
    %122 = vector.broadcast %119 : vector<8x1xf32> to vector<8x512xf32>
    %123 = arith.mulf %102, %122 : vector<8x512xf32>
    %124 = vector.broadcast %121 : vector<8x1xf32> to vector<8x512xf32>
    %125 = arith.addf %123, %124 : vector<8x512xf32>
    %126 = arith.addf %125, %0 : vector<8x512xf32>
    %cst_35 = arith.constant 0.000000e+00 : f32
    %127 = vector.broadcast %cst_35 : f32 to vector<8x512xf32>
    %128 = arith.maximumf %126, %127 : vector<8x512xf32>
    %c0_36 = arith.constant 0 : index
    %c0_37 = arith.constant 0 : index
    %129 = vector.load %arg8[%c0_36, %c0_37] : memref<8x512xf32, #tpu.memory_space<vmem>>, vector<8x512xf32>
    tpu.vector_store %arg8[%c0_36, %c0_37], %128 {strides = array<i32>} : memref<8x512xf32, #tpu.memory_space<vmem>>, vector<8x512xf32>,
    return
  }
}

</mosaic_0001>

<llo_original>
// kernel: tpu_custom_call.1
$region0: #{tpu_custom_call.1}
  #allocation0 [shape = 'u32[]', space=smem, size = 0x4, offset = 0x4, fixed_abs, tag = 'smem constant byte address 0x4 - core index']
  #allocation1 [shape = 'u32[144,128]{1,0:T(1,128)}', space=vmem, size = 0x12000, scoped, tag = 'internal scratch']
  %s0 = inlined_call_operand.vmem [shape: f32[8,512], index: 0, kind: input, shape index: {}]
  %s1 = inlined_call_operand.hbm [shape: f32[9,512], index: 1, kind: input, shape index: {}]
  %s2 = inlined_call_operand.vmem [shape: f32[8,72], index: 2, kind: input, shape index: {}]
  %s3 = inlined_call_operand.vmem [shape: f32[8,1], index: 3, kind: input, shape index: {}]
  %s4 = inlined_call_operand.vmem [shape: f32[8,1], index: 4, kind: input, shape index: {}]
  %s5 = inlined_call_operand.vmem [shape: f32[8,72], index: 5, kind: input, shape index: {}]
  %s6 = inlined_call_operand.vmem [shape: f32[8,1], index: 6, kind: input, shape index: {}]
  %s7 = inlined_call_operand.vmem [shape: f32[8,1], index: 7, kind: input, shape index: {}]
  %s8 = inlined_call_operand.hbm [shape: f32[8,512], index: 8, kind: output, shape index: {}]
  %s9 = sld [smem:[#allocation0]]
  $region46: #{tpu_custom_call.1} parent=0
    _
  %s11 = ssub.s32 1, %s9
  %s12 = scalar_select 0, %s11, %s9
  $region1: #{tpu_custom_call.1} parent=0
    #allocation2 [shape = 'u8[32768]{0}', space=vmem, size = 0x8000, scoped, tag = 'input window, operand 1, single buffered']
    #allocation3 [shape = 's32[1]{0}', space=sflag, size = 0x4, scoped, tag = 'scoped memory for tpu_custom_call.1']
    #allocation4 [shape = 's32[1]{0}', space=sflag, size = 0x4, scoped, tag = 'scoped memory for tpu_custom_call.1']
    #allocation5 [shape = 'u8[16384]{0}', space=vmem, size = 0x4000, scoped, tag = 'output window, operand 0, single buffered']
    %13 = vsyncpa [#allocation3], 0
    %14 = vsyncpa [#allocation4], 0
    // Predicated region
    $region2: #{tpu_custom_call.1} parent=1 // pred_check
      _
    $region3: #{tpu_custom_call.1} parent=1 // pred_check_branch
      %16 = sbr.rel (0) target = $region5
    $region4: #{tpu_custom_call.1} parent=1 // pred_region
      _
    $region5: #{tpu_custom_call.1} parent=1 // pred_fallthru
      _
    // Predicated region
    $region6: #{tpu_custom_call.1} parent=1 // pred_check
      _
    $region7: #{tpu_custom_call.1} parent=1 // pred_check_branch
      %18 = sbr.rel (0) target = $region9
    $region8: #{tpu_custom_call.1} parent=1 // pred_region
      %s20 = ssub.s32 1024, 1024
      %21 = vsyncadd [#allocation3], %s20
      %s22 = sshll.u32 [#allocation2], 4
      %s23 = int_to_ptr.vmem [resolvable:$true] %s22
      %28 = dma.hbm_to_vmem [thread:$0]  %s1, 1024, %s23, [#allocation3], 512, 512, 32
    $region9: #{tpu_custom_call.1} parent=1 // pred_fallthru
      _
    // Predicated region
    $region10: #{tpu_custom_call.1} parent=1 // pred_check
      _
    $region11: #{tpu_custom_call.1} parent=1 // pred_check_branch
      %30 = sbr.rel (0) target = $region13
    $region12: #{tpu_custom_call.1} parent=1 // pred_region
      _
    $region13: #{tpu_custom_call.1} parent=1 // pred_fallthru
      _
    // Predicated region
    $region14: #{tpu_custom_call.1} parent=1 // pred_check
      _
    $region15: #{tpu_custom_call.1} parent=1 // pred_check_branch
      %32 = sbr.rel (0) target = $region17
    $region16: #{tpu_custom_call.1} parent=1 // pred_region
      _
    $region17: #{tpu_custom_call.1} parent=1 // pred_fallthru
      _
    // Predicated region
    $region18: #{tpu_custom_call.1} parent=1 // pred_check
      _
    $region19: #{tpu_custom_call.1} parent=1 // pred_check_branch
      %34 = sbr.rel (0) target = $region21
    $region20: #{tpu_custom_call.1} parent=1 // pred_region
      _
    $region21: #{tpu_custom_call.1} parent=1 // pred_fallthru
      _
    // Predicated region
    $region22: #{tpu_custom_call.1} parent=1 // pred_check
      _
    $region23: #{tpu_custom_call.1} parent=1 // pred_check_branch
      %36 = sbr.rel (0) target = $region25
    $region24: #{tpu_custom_call.1} parent=1 // pred_region
      _
    $region25: #{tpu_custom_call.1} parent=1 // pred_fallthru
      _
    // Predicated region
    $region26: #{tpu_custom_call.1} parent=1 // pred_check
      _
    $region27: #{tpu_custom_call.1} parent=1 // pred_check_branch
      %38 = sbr.rel (0) target = $region29
    $region28: #{tpu_custom_call.1} parent=1 // pred_region
      _
    $region29: #{tpu_custom_call.1} parent=1 // pred_fallthru
      _
    // Predicated region
    $region30: #{tpu_custom_call.1} parent=1 // pred_check
      _
    $region31: #{tpu_custom_call.1} parent=1 // pred_check_branch
      %40 = sbr.rel (0) target = $region33
    $region32: #{tpu_custom_call.1} parent=1 // pred_region
      _
    $region33: #{tpu_custom_call.1} parent=1 // pred_fallthru
      _
    // Predicated region
    $region34: #{tpu_custom_call.1} parent=1 // pred_check
      _
    $region35: #{tpu_custom_call.1} parent=1 // pred_check_branch
      %42 = sbr.rel (0) target = $region37
    $region36: #{tpu_custom_call.1} parent=1 // pred_region
      %43 = dma.done [#allocation3], 1024
    $region37: #{tpu_custom_call.1} parent=1 // pred_fallthru
      _
    %v44 = vld [vmem:[%s0] sm:$0xff]
    %v45 = vld [vmem:[%s0 + $0x8] sm:$0xff]
    %v46 = vld [vmem:[%s0 + $0x10] sm:$0xff]
    %v47 = vld [vmem:[%s0 + $0x18] sm:$0xff]
    %v48 = vld [vmem:[#allocation2] sm:$0xff]
    %v49 = vld [vmem:[#allocation2 + $0x8] sm:$0xff]
    %v50 = vld [vmem:[#allocation2 + $0x10] sm:$0xff]
    %v51 = vld [vmem:[#allocation2 + $0x18] sm:$0xff]
    %v52 = vld [vmem:[#allocation2 + $0x20] sm:$0x1]
    %v53 = vld [vmem:[#allocation2 + $0x28] sm:$0x1]
    %v54 = vld [vmem:[#allocation2 + $0x30] sm:$0x1]
    %v55 = vld [vmem:[#allocation2 + $0x38] sm:$0x1]
    %v56 = vld [vmem:[%s2] sm:$0xff]
    %57 = vrot.lane.b32.xlu0 %v44, 17
    %v58 = vpop.permute.xlu0 %57
    %59 = vrot.lane.b32.xlu0 %v45, 17
    %v60 = vpop.permute.xlu0 %59
    %61 = vrot.lane.b32.xlu0 %v46, 17
    %v62 = vpop.permute.xlu0 %61
    %63 = vrot.lane.b32.xlu0 %v47, 17
    %v64 = vpop.permute.xlu0 %63
    %v65 = vlaneseq
    %v66 = vand.u32 %v65, 127
    %vm67 = vcmp.lt.s32.totalorder %v66, 17
    %v68 = vsel %vm67, %v62, %v64
    %v69 = vsel %vm67, %v60, %v62
    %v70 = vsel %vm67, %v58, %v60
    %v71 = vsel %vm67, %v64, %v58
    %v72 = vlaneseq
    %v73 = vshrl.u32 %v72, 7
    %v74 = vsub.s32 0, %v73
    %v75 = vrot.slane %v48, %v74
    %v76 = vlaneseq
    %v77 = vshrl.u32 %v76, 7
    %v78 = vsub.s32 0, %v77
    %v79 = vrot.slane %v49, %v78
    %v80 = vlaneseq
    %v81 = vshrl.u32 %v80, 7
    %v82 = vsub.s32 0, %v81
    %v83 = vrot.slane %v50, %v82
    %v84 = vlaneseq
    %v85 = vshrl.u32 %v84, 7
    %v86 = vsub.s32 0, %v85
    %v87 = vrot.slane %v51, %v86
    %v88 = vmul.f32 %v71, %v75
    %v89 = vmul.f32 %v70, %v79
    %v90 = vmul.f32 %v69, %v83
    %v91 = vmul.f32 %v68, %v87
    %92 = vrot.lane.b32.xlu0 %v44, 16
    %v93 = vpop.permute.xlu0 %92
    %94 = vrot.lane.b32.xlu0 %v45, 16
    %v95 = vpop.permute.xlu0 %94
    %96 = vrot.lane.b32.xlu0 %v46, 16
    %v97 = vpop.permute.xlu0 %96
    %98 = vrot.lane.b32.xlu0 %v47, 16
    %v99 = vpop.permute.xlu0 %98
    %vm100 = vcmp.lt.s32.totalorder %v66, 16
    %v101 = vsel %vm100, %v97, %v99
    %v102 = vsel %vm100, %v95, %v97
    %v103 = vsel %vm100, %v93, %v95
    %v104 = vsel %vm100, %v99, %v93
    %v105 = vlaneseq
    %v106 = vshrl.u32 %v105, 7
    %v107 = vsub.s32 1, %v106
    %v108 = vrot.slane %v48, %v107
    %v109 = vlaneseq
    %v110 = vshrl.u32 %v109, 7
    %v111 = vsub.s32 1, %v110
    %v112 = vrot.slane %v49, %v111
    %v113 = vlaneseq
    %v114 = vshrl.u32 %v113, 7
    %v115 = vsub.s32 1, %v114
    %v116 = vrot.slane %v50, %v115
    %v117 = vlaneseq
    %v118 = vshrl.u32 %v117, 7
    %v119 = vsub.s32 1, %v118
    %v120 = vrot.slane %v51, %v119
    %v121 = vmul.f32 %v104, %v108
    %v122 = vmul.f32 %v103, %v112
    %v123 = vmul.f32 %v102, %v116
    %v124 = vmul.f32 %v101, %v120
    %125 = vrot.lane.b32.xlu0 %v44, 15
    %v126 = vpop.permute.xlu0 %125
    %127 = vrot.lane.b32.xlu0 %v45, 15
    %v128 = vpop.permute.xlu0 %127
    %129 = vrot.lane.b32.xlu0 %v46, 15
    %v130 = vpop.permute.xlu0 %129
    %131 = vrot.lane.b32.xlu0 %v47, 15
    %v132 = vpop.permute.xlu0 %131
    %vm133 = vcmp.lt.s32.totalorder %v66, 15
    %v134 = vsel %vm133, %v130, %v132
    %v135 = vsel %vm133, %v128, %v130
    %v136 = vsel %vm133, %v126, %v128
    %v137 = vsel %vm133, %v132, %v126
    %v138 = vlaneseq
    %v139 = vshrl.u32 %v138, 7
    %v140 = vsub.s32 2, %v139
    %v141 = vrot.slane %v48, %v140
    %v142 = vlaneseq
    %v143 = vshrl.u32 %v142, 7
    %v144 = vsub.s32 2, %v143
    %v145 = vrot.slane %v49, %v144
    %v146 = vlaneseq
    %v147 = vshrl.u32 %v146, 7
    %v148 = vsub.s32 2, %v147
    %v149 = vrot.slane %v50, %v148
    %v150 = vlaneseq
    %v151 = vshrl.u32 %v150, 7
    %v152 = vsub.s32 2, %v151
    %v153 = vrot.slane %v51, %v152
    %v154 = vmul.f32 %v137, %v141
    %v155 = vmul.f32 %v136, %v145
    %v156 = vmul.f32 %v135, %v149
    %v157 = vmul.f32 %v134, %v153
    %158 = vrot.lane.b32.xlu0 %v44, 1
    %v159 = vpop.permute.xlu0 %158
    %160 = vrot.lane.b32.xlu0 %v45, 1
    %v161 = vpop.permute.xlu0 %160
    %162 = vrot.lane.b32.xlu0 %v46, 1
    %v163 = vpop.permute.xlu0 %162
    %164 = vrot.lane.b32.xlu0 %v47, 1
    %v165 = vpop.permute.xlu0 %164
    %vm166 = vcmp.lt.s32.totalorder %v66, 1
    %v167 = vsel %vm166, %v163, %v165
    %v168 = vsel %vm166, %v161, %v163
    %v169 = vsel %vm166, %v159, %v161
    %v170 = vsel %vm166, %v165, %v159
    %v171 = vlaneseq
    %v172 = vshrl.u32 %v171, 7
    %v173 = vsub.s32 3, %v172
    %v174 = vrot.slane %v48, %v173
    %v175 = vlaneseq
    %v176 = vshrl.u32 %v175, 7
    %v177 = vsub.s32 3, %v176
    %v178 = vrot.slane %v49, %v177
    %v179 = vlaneseq
    %v180 = vshrl.u32 %v179, 7
    %v181 = vsub.s32 3, %v180
    %v182 = vrot.slane %v50, %v181
    %v183 = vlaneseq
    %v184 = vshrl.u32 %v183, 7
    %v185 = vsub.s32 3, %v184
    %v186 = vrot.slane %v51, %v185
    %v187 = vmul.f32 %v170, %v174
    %v188 = vmul.f32 %v169, %v178
    %v189 = vmul.f32 %v168, %v182
    %v190 = vmul.f32 %v167, %v186
    %v191 = vlaneseq
    %v192 = vshrl.u32 %v191, 7
    %v193 = vsub.s32 4, %v192
    %v194 = vrot.slane %v48, %v193
    %v195 = vlaneseq
    %v196 = vshrl.u32 %v195, 7
    %v197 = vsub.s32 4, %v196
    %v198 = vrot.slane %v49, %v197
    %v199 = vlaneseq
    %v200 = vshrl.u32 %v199, 7
    %v201 = vsub.s32 4, %v200
    %v202 = vrot.slane %v50, %v201
    %v203 = vlaneseq
    %v204 = vshrl.u32 %v203, 7
    %v205 = vsub.s32 4, %v204
    %v206 = vrot.slane %v51, %v205
    %v207 = vmul.f32 %v44, %v194
    %v208 = vmul.f32 %v45, %v198
    %v209 = vmul.f32 %v46, %v202
    %v210 = vmul.f32 %v47, %v206
    %211 = vrot.lane.b32.xlu0 %v44, 127
    %v212 = vpop.permute.xlu0 %211
    %213 = vrot.lane.b32.xlu0 %v45, 127
    %v214 = vpop.permute.xlu0 %213
    %215 = vrot.lane.b32.xlu0 %v46, 127
    %v216 = vpop.permute.xlu0 %215
    %217 = vrot.lane.b32.xlu0 %v47, 127
    %v218 = vpop.permute.xlu0 %217
    %vm219 = vcmp.lt.s32.totalorder %v66, 127
    %v220 = vsel %vm219, %v216, %v218
    %v221 = vsel %vm219, %v214, %v216
    %v222 = vsel %vm219, %v212, %v214
    %v223 = vsel %vm219, %v218, %v212
    %v224 = vlaneseq
    %v225 = vshrl.u32 %v224, 7
    %v226 = vsub.s32 5, %v225
    %v227 = vrot.slane %v48, %v226
    %v228 = vlaneseq
    %v229 = vshrl.u32 %v228, 7
    %v230 = vsub.s32 5, %v229
    %v231 = vrot.slane %v49, %v230
    %v232 = vlaneseq
    %v233 = vshrl.u32 %v232, 7
    %v234 = vsub.s32 5, %v233
    %v235 = vrot.slane %v50, %v234
    %v236 = vlaneseq
    %v237 = vshrl.u32 %v236, 7
    %v238 = vsub.s32 5, %v237
    %v239 = vrot.slane %v51, %v238
    %v240 = vmul.f32 %v222, %v227
    %v241 = vmul.f32 %v221, %v231
    %v242 = vmul.f32 %v220, %v235
    %v243 = vmul.f32 %v223, %v239
    %244 = vrot.lane.b32.xlu0 %v44, 113
    %v245 = vpop.permute.xlu0 %244
    %246 = vrot.lane.b32.xlu0 %v45, 113
    %v247 = vpop.permute.xlu0 %246
    %248 = vrot.lane.b32.xlu0 %v46, 113
    %v249 = vpop.permute.xlu0 %248
    %250 = vrot.lane.b32.xlu0 %v47, 113
    %v251 = vpop.permute.xlu0 %250
    %vm252 = vcmp.lt.s32.totalorder %v66, 113
    %v253 = vsel %vm252, %v249, %v251
    %v254 = vsel %vm252, %v247, %v249
    %v255 = vsel %vm252, %v245, %v247
    %v256 = vsel %vm252, %v251, %v245
    %v257 = vlaneseq
    %v258 = vshrl.u32 %v257, 7
    %v259 = vsub.s32 6, %v258
    %v260 = vrot.slane %v48, %v259
    %v261 = vlaneseq
    %v262 = vshrl.u32 %v261, 7
    %v263 = vsub.s32 6, %v262
    %v264 = vrot.slane %v49, %v263
    %v265 = vlaneseq
    %v266 = vshrl.u32 %v265, 7
    %v267 = vsub.s32 6, %v266
    %v268 = vrot.slane %v50, %v267
    %v269 = vlaneseq
    %v270 = vshrl.u32 %v269, 7
    %v271 = vsub.s32 6, %v270
    %v272 = vrot.slane %v51, %v271
    %v273 = vmul.f32 %v255, %v260
    %v274 = vmul.f32 %v254, %v264
    %v275 = vmul.f32 %v253, %v268
    %v276 = vmul.f32 %v256, %v272
    %277 = vrot.lane.b32.xlu0 %v44, 112
    %v278 = vpop.permute.xlu0 %277
    %279 = vrot.lane.b32.xlu0 %v45, 112
    %v280 = vpop.permute.xlu0 %279
    %281 = vrot.lane.b32.xlu0 %v46, 112
    %v282 = vpop.permute.xlu0 %281
    %283 = vrot.lane.b32.xlu0 %v47, 112
    %v284 = vpop.permute.xlu0 %283
    %vm285 = vcmp.lt.s32.totalorder %v66, 112
    %v286 = vsel %vm285, %v282, %v284
    %v287 = vsel %vm285, %v280, %v282
    %v288 = vsel %vm285, %v278, %v280
    %v289 = vsel %vm285, %v284, %v278
    %v290 = vlaneseq
    %v291 = vshrl.u32 %v290, 7
    %v292 = vsub.s32 7, %v291
    %v293 = vrot.slane %v48, %v292
    %v294 = vlaneseq
    %v295 = vshrl.u32 %v294, 7
    %v296 = vsub.s32 7, %v295
    %v297 = vrot.slane %v49, %v296
    %v298 = vlaneseq
    %v299 = vshrl.u32 %v298, 7
    %v300 = vsub.s32 7, %v299
    %v301 = vrot.slane %v50, %v300
    %v302 = vlaneseq
    %v303 = vshrl.u32 %v302, 7
    %v304 = vsub.s32 7, %v303
    %v305 = vrot.slane %v51, %v304
    %v306 = vmul.f32 %v288, %v293
    %v307 = vmul.f32 %v287, %v297
    %v308 = vmul.f32 %v286, %v301
    %v309 = vmul.f32 %v289, %v305
    %310 = vrot.lane.b32.xlu0 %v44, 111
    %v311 = vpop.permute.xlu0 %310
    %312 = vrot.lane.b32.xlu0 %v45, 111
    %v313 = vpop.permute.xlu0 %312
    %314 = vrot.lane.b32.xlu0 %v46, 111
    %v315 = vpop.permute.xlu0 %314
    %316 = vrot.lane.b32.xlu0 %v47, 111
    %v317 = vpop.permute.xlu0 %316
    %vm318 = vcmp.lt.s32.totalorder %v66, 111
    %v319 = vsel %vm318, %v315, %v317
    %v320 = vsel %vm318, %v313, %v315
    %v321 = vsel %vm318, %v311, %v313
    %v322 = vsel %vm318, %v317, %v311
    %v323 = vlaneseq
    %v324 = vshrl.u32 %v323, 7
    %v325 = vsub.s32 0, %v324
    %v326 = vrot.slane %v52, %v325
    %v327 = vlaneseq
    %v328 = vshrl.u32 %v327, 7
    %v329 = vsub.s32 0, %v328
    %v330 = vrot.slane %v53, %v329
    %v331 = vlaneseq
    %v332 = vshrl.u32 %v331, 7
    %v333 = vsub.s32 0, %v332
    %v334 = vrot.slane %v54, %v333
    %v335 = vlaneseq
    %v336 = vshrl.u32 %v335, 7
    %v337 = vsub.s32 0, %v336
    %v338 = vrot.slane %v55, %v337
    %v339 = vmul.f32 %v321, %v326
    %v340 = vmul.f32 %v320, %v330
    %v341 = vmul.f32 %v319, %v334
    %v342 = vmul.f32 %v322, %v338
    %vm343 = vcmask 588800
    %v345 = vsel %vm343, %v56, 0
    %347 = vmatprep.subr.mxu0 %v89
    %348 = vmatpush1.msra.mxu0 %v88
    %349 = vmatprep.subr.mxu0 %v122
    %350 = vmatpush1.msra.mxu0 %v121
    %351 = vmatprep.subr.mxu0 %v155
    %352 = vmatpush1.msra.mxu0 %v154
    %353 = vmatprep.subr.mxu0 %v188
    %354 = vmatpush1.msra.mxu0 %v187
    %355 = vmatprep.subr.mxu0 %v208
    %356 = vmatpush1.msra.mxu0 %v207
    %357 = vmatprep.subr.mxu0 %v241
    %358 = vmatpush1.msra.mxu0 %v240
    %359 = vmatprep.subr.mxu0 %v274
    %360 = vmatpush1.msra.mxu0 %v273
    %361 = vmatprep.subr.mxu0 %v307
    %362 = vmatpush1.msra.mxu0 %v306
    %363 = vmatprep.subr.mxu0 %v340
    %364 = vmatpush1.msra.mxu0 %v339
    %365 = vmatprep.subr.mxu0 0.0
    %366 = vmatpush1.msra.mxu0 0.0
    %367 = vmatprep.subr.mxu0 0.0
    %368 = vmatpush1.msra.mxu0 0.0
    %369 = vmatprep.subr.mxu0 0.0
    %370 = vmatpush1.msra.mxu0 0.0
    %371 = vmatprep.subr.mxu0 0.0
    %372 = vmatpush1.msra.mxu0 0.0
    %373 = vmatprep.subr.mxu0 0.0
    %374 = vmatpush1.msra.mxu0 0.0
    %375 = vmatprep.subr.mxu0 0.0
    %376 = vmatpush1.msra.mxu0 0.0
    %377 = vmatprep.subr.mxu0 0.0
    %378 = vmatpush1.msra.mxu0 0.0
    %379 = vmatprep.subr.mxu0 0.0
    %380 = vmatpush1.msra.mxu0 0.0
    %381 = vmatprep.subr.mxu0 0.0
    %382 = vmatpush1.msra.mxu0 0.0
    %383 = vmatprep.subr.mxu0 0.0
    %384 = vmatpush1.msra.mxu0 0.0
    %385 = vmatprep.subr.mxu0 0.0
    %386 = vmatpush1.msra.mxu0 0.0
    %387 = vmatprep.subr.mxu0 0.0
    %388 = vmatpush1.msra.mxu0 0.0
    %389 = vmatprep.subr.mxu0 0.0
    %390 = vmatpush1.msra.mxu0 0.0
    %391 = vmatprep.subr.mxu0 0.0
    %392 = vmatpush1.msra.mxu0 0.0
    %393 = vmatprep.subr.mxu0 0.0
    %394 = vmatpush1.msra.mxu0 0.0
    %395 = vmatprep.subr.mxu0 0.0
    %396 = vmatpush1.msra.mxu0 0.0
    %397 = vmatprep.subr.mxu0 0.0
    %398 = vmatpush1.msra.mxu0 0.0
    %399 = vmatprep.subr.mxu0 0.0
    %400 = vmatpush1.msra.mxu0 0.0
    %401 = vmatprep.subr.mxu0 0.0
    %402 = vmatpush1.msra.mxu0 0.0
    %403 = vmatprep.subr.mxu0 0.0
    %404 = vmatpush1.msra.mxu0 0.0
    %405 = vmatprep.subr.mxu0 0.0
    %406 = vmatpush1.msra.mxu0 0.0
    %407 = vmatprep.subr.mxu0 0.0
    %408 = vmatpush1.msra.mxu0 0.0
    %409 = vmatprep.subr.mxu0 0.0
    %410 = vmatpush1.msra.mxu0 0.0
    %411 = vmatprep.mubr.f32.mxu0 0.0
    %412 = vmatmul.mubr.f32.gmra.mrb[0].mxu0 %v345
    %v413 = vpop.f32.mrb[0].mxu0
    %v414 = vadd.f32 0.0, %v413
    %v415 = vpop.f32.mrb[0].mxu0
    %v416 = vadd.f32 0.0, %v415
    %417 = vdwg.mxu0
    %418 = vmatprep.subr.mxu0 %v91
    %419 = vmatpush1.msra.mxu0 %v90
    %420 = vmatprep.subr.mxu0 %v124
    %421 = vmatpush1.msra.mxu0 %v123
    %422 = vmatprep.subr.mxu0 %v157
    %423 = vmatpush1.msra.mxu0 %v156
    %424 = vmatprep.subr.mxu0 %v190
    %425 = vmatpush1.msra.mxu0 %v189
    %426 = vmatprep.subr.mxu0 %v210
    %427 = vmatpush1.msra.mxu0 %v209
    %428 = vmatprep.subr.mxu0 %v243
    %429 = vmatpush1.msra.mxu0 %v242
    %430 = vmatprep.subr.mxu0 %v276
    %431 = vmatpush1.msra.mxu0 %v275
    %432 = vmatprep.subr.mxu0 %v309
    %433 = vmatpush1.msra.mxu0 %v308
    %434 = vmatprep.subr.mxu0 %v342
    %435 = vmatpush1.msra.mxu0 %v341
    %436 = vmatprep.subr.mxu0 0.0
    %437 = vmatpush1.msra.mxu0 0.0
    %438 = vmatprep.subr.mxu0 0.0
    %439 = vmatpush1.msra.mxu0 0.0
    %440 = vmatprep.subr.mxu0 0.0
    %441 = vmatpush1.msra.mxu0 0.0
    %442 = vmatprep.subr.mxu0 0.0
    %443 = vmatpush1.msra.mxu0 0.0
    %444 = vmatprep.subr.mxu0 0.0
    %445 = vmatpush1.msra.mxu0 0.0
    %446 = vmatprep.subr.mxu0 0.0
    %447 = vmatpush1.msra.mxu0 0.0
    %448 = vmatprep.subr.mxu0 0.0
    %449 = vmatpush1.msra.mxu0 0.0
    %450 = vmatprep.subr.mxu0 0.0
    %451 = vmatpush1.msra.mxu0 0.0
    %452 = vmatprep.subr.mxu0 0.0
    %453 = vmatpush1.msra.mxu0 0.0
    %454 = vmatprep.subr.mxu0 0.0
    %455 = vmatpush1.msra.mxu0 0.0
    %456 = vmatprep.subr.mxu0 0.0
    %457 = vmatpush1.msra.mxu0 0.0
    %458 = vmatprep.subr.mxu0 0.0
    %459 = vmatpush1.msra.mxu0 0.0
    %460 = vmatprep.subr.mxu0 0.0
    %461 = vmatpush1.msra.mxu0 0.0
    %462 = vmatprep.subr.mxu0 0.0
    %463 = vmatpush1.msra.mxu0 0.0
    %464 = vmatprep.subr.mxu0 0.0
    %465 = vmatpush1.msra.mxu0 0.0
    %466 = vmatprep.subr.mxu0 0.0
    %467 = vmatpush1.msra.mxu0 0.0
    %468 = vmatprep.subr.mxu0 0.0
    %469 = vmatpush1.msra.mxu0 0.0
    %470 = vmatprep.subr.mxu0 0.0
    %471 = vmatpush1.msra.mxu0 0.0
    %472 = vmatprep.subr.mxu0 0.0
    %473 = vmatpush1.msra.mxu0 0.0
    %474 = vmatprep.subr.mxu0 0.0
    %475 = vmatpush1.msra.mxu0 0.0
    %476 = vmatprep.subr.mxu0 0.0
    %477 = vmatpush1.msra.mxu0 0.0
    %478 = vmatprep.subr.mxu0 0.0
    %479 = vmatpush1.msra.mxu0 0.0
    %480 = vmatprep.subr.mxu0 0.0
    %481 = vmatpush1.msra.mxu0 0.0
    %482 = vmatprep.mubr.f32.mxu0 0.0
    %483 = vmatmul.mubr.f32.gmra.mrb[0].mxu0 %v345
    %v484 = vpop.f32.mrb[0].mxu0
    %v485 = vadd.f32 0.0, %v484
    %v486 = vpop.f32.mrb[0].mxu0
    %v487 = vadd.f32 0.0, %v486
    %488 = vdwg.mxu0
    %v489 = vld [vmem:[%s3] sm:$0xff]
    %v490 = vld [vmem:[%s4] sm:$0xff]
    %v491 = vadd.f32 %v414, %v416
    %v492 = vadd.f32 %v491, %v485
    %v493 = vadd.f32 %v492, %v487
    %494 = vadd.xlane.f32.xlu0 %v493
    %v495 = vpop.xlane.xlu0 %494
    %v496 = vmul.f32 %v414, %v414
    %v497 = vmul.f32 %v416, %v416
    %v498 = vmul.f32 %v485, %v485
    %v499 = vmul.f32 %v487, %v487
    %v500 = vadd.f32 %v496, %v497
    %v501 = vadd.f32 %v500, %v498
    %v502 = vadd.f32 %v501, %v499
    %503 = vadd.xlane.f32.xlu0 %v502
    %v504 = vpop.xlane.xlu0 %503
    %v505 = vmul.f32 %v495, 0.001953125
    %v506 = vmul.f32 %v504, 0.001953125
    %v507 = vmul.f32 %v505, %v505
    %v508 = vsub.f32 %v506, %v507
    %v509 = vadd.f32 %v508, 1e-05
    %v510 = vrsqrt.pop %v509
    %v511 = vmul.f32 %v489, %v510
    %v512 = vmul.f32 %v505, %v511
    %v513 = vsub.f32 %v490, %v512
    %515 = vset.pattern.permute.xlu0 0
    %516 = vperm.xlu0 %515, %v511
    %v517 = vpop.permute.xlu0 %516
    %v519 = vmul.f32 %v414, %v517
    %v520 = vmul.f32 %v416, %v517
    %v521 = vmul.f32 %v485, %v517
    %v522 = vmul.f32 %v487, %v517
    %524 = vset.pattern.permute.xlu0 0
    %525 = vperm.xlu0 %524, %v513
    %v526 = vpop.permute.xlu0 %525
    %v528 = vadd.f32 %v519, %v526
    %v529 = vadd.f32 %v520, %v526
    %v530 = vadd.f32 %v521, %v526
    %v531 = vadd.f32 %v522, %v526
    %v532 = vmax.f32 %v528, 0.0
    %v533 = vmax.f32 %v529, 0.0
    %v534 = vmax.f32 %v530, 0.0
    %v535 = vmax.f32 %v531, 0.0
    %v536 = vld [vmem:[%s5] sm:$0xff]
    %537 = vrot.lane.b32.xlu0 %v532, 17
    %v538 = vpop.permute.xlu0 %537
    %539 = vrot.lane.b32.xlu0 %v533, 17
    %v540 = vpop.permute.xlu0 %539
    %541 = vrot.lane.b32.xlu0 %v534, 17
    %v542 = vpop.permute.xlu0 %541
    %543 = vrot.lane.b32.xlu0 %v535, 17
    %v544 = vpop.permute.xlu0 %543
    %v545 = vsel %vm67, %v542, %v544
    %v546 = vsel %vm67, %v540, %v542
    %v547 = vsel %vm67, %v538, %v540
    %v548 = vsel %vm67, %v544, %v538
    %v549 = vmul.f32 %v548, %v75
    %v550 = vmul.f32 %v547, %v79
    %v551 = vmul.f32 %v546, %v83
    %v552 = vmul.f32 %v545, %v87
    %553 = vrot.lane.b32.xlu0 %v532, 16
    %v554 = vpop.permute.xlu0 %553
    %555 = vrot.lane.b32.xlu0 %v533, 16
    %v556 = vpop.permute.xlu0 %555
    %557 = vrot.lane.b32.xlu0 %v534, 16
    %v558 = vpop.permute.xlu0 %557
    %559 = vrot.lane.b32.xlu0 %v535, 16
    %v560 = vpop.permute.xlu0 %559
    %v561 = vsel %vm100, %v558, %v560
    %v562 = vsel %vm100, %v556, %v558
    %v563 = vsel %vm100, %v554, %v556
    %v564 = vsel %vm100, %v560, %v554
    %v565 = vmul.f32 %v564, %v108
    %v566 = vmul.f32 %v563, %v112
    %v567 = vmul.f32 %v562, %v116
    %v568 = vmul.f32 %v561, %v120
    %569 = vrot.lane.b32.xlu0 %v532, 15
    %v570 = vpop.permute.xlu0 %569
    %571 = vrot.lane.b32.xlu0 %v533, 15
    %v572 = vpop.permute.xlu0 %571
    %573 = vrot.lane.b32.xlu0 %v534, 15
    %v574 = vpop.permute.xlu0 %573
    %575 = vrot.lane.b32.xlu0 %v535, 15
    %v576 = vpop.permute.xlu0 %575
    %v577 = vsel %vm133, %v574, %v576
    %v578 = vsel %vm133, %v572, %v574
    %v579 = vsel %vm133, %v570, %v572
    %v580 = vsel %vm133, %v576, %v570
    %v581 = vmul.f32 %v580, %v141
    %v582 = vmul.f32 %v579, %v145
    %v583 = vmul.f32 %v578, %v149
    %v584 = vmul.f32 %v577, %v153
    %585 = vrot.lane.b32.xlu0 %v532, 1
    %v586 = vpop.permute.xlu0 %585
    %587 = vrot.lane.b32.xlu0 %v533, 1
    %v588 = vpop.permute.xlu0 %587
    %589 = vrot.lane.b32.xlu0 %v534, 1
    %v590 = vpop.permute.xlu0 %589
    %591 = vrot.lane.b32.xlu0 %v535, 1
    %v592 = vpop.permute.xlu0 %591
    %v593 = vsel %vm166, %v590, %v592
    %v594 = vsel %vm166, %v588, %v590
    %v595 = vsel %vm166, %v586, %v588
    %v596 = vsel %vm166, %v592, %v586
    %v597 = vmul.f32 %v596, %v174
    %v598 = vmul.f32 %v595, %v178
    %v599 = vmul.f32 %v594, %v182
    %v600 = vmul.f32 %v593, %v186
    %v601 = vmul.f32 %v532, %v194
    %v602 = vmul.f32 %v533, %v198
    %v603 = vmul.f32 %v534, %v202
    %v604 = vmul.f32 %v535, %v206
    %605 = vrot.lane.b32.xlu0 %v532, 127
    %v606 = vpop.permute.xlu0 %605
    %607 = vrot.lane.b32.xlu0 %v533, 127
    %v608 = vpop.permute.xlu0 %607
    %609 = vrot.lane.b32.xlu0 %v534, 127
    %v610 = vpop.permute.xlu0 %609
    %611 = vrot.lane.b32.xlu0 %v535, 127
    %v612 = vpop.permute.xlu0 %611
    %v613 = vsel %vm219, %v610, %v612
    %v614 = vsel %vm219, %v608, %v610
    %v615 = vsel %vm219, %v606, %v608
    %v616 = vsel %vm219, %v612, %v606
    %v617 = vmul.f32 %v615, %v227
    %v618 = vmul.f32 %v614, %v231
    %v619 = vmul.f32 %v613, %v235
    %v620 = vmul.f32 %v616, %v239
    %621 = vrot.lane.b32.xlu0 %v532, 113
    %v622 = vpop.permute.xlu0 %621
    %623 = vrot.lane.b32.xlu0 %v533, 113
    %v624 = vpop.permute.xlu0 %623
    %625 = vrot.lane.b32.xlu0 %v534, 113
    %v626 = vpop.permute.xlu0 %625
    %627 = vrot.lane.b32.xlu0 %v535, 113
    %v628 = vpop.permute.xlu0 %627
    %v629 = vsel %vm252, %v626, %v628
    %v630 = vsel %vm252, %v624, %v626
    %v631 = vsel %vm252, %v622, %v624
    %v632 = vsel %vm252, %v628, %v622
    %v633 = vmul.f32 %v631, %v260
    %v634 = vmul.f32 %v630, %v264
    %v635 = vmul.f32 %v629, %v268
    %v636 = vmul.f32 %v632, %v272
    %637 = vrot.lane.b32.xlu0 %v532, 112
    %v638 = vpop.permute.xlu0 %637
    %639 = vrot.lane.b32.xlu0 %v533, 112
    %v640 = vpop.permute.xlu0 %639
    %641 = vrot.lane.b32.xlu0 %v534, 112
    %v642 = vpop.permute.xlu0 %641
    %643 = vrot.lane.b32.xlu0 %v535, 112
    %v644 = vpop.permute.xlu0 %643
    %v645 = vsel %vm285, %v642, %v644
    %v646 = vsel %vm285, %v640, %v642
    %v647 = vsel %vm285, %v638, %v640
    %v648 = vsel %vm285, %v644, %v638
    %v649 = vmul.f32 %v647, %v293
    %v650 = vmul.f32 %v646, %v297
    %v651 = vmul.f32 %v645, %v301
    %v652 = vmul.f32 %v648, %v305
    %653 = vrot.lane.b32.xlu0 %v532, 111
    %v654 = vpop.permute.xlu0 %653
    %655 = vrot.lane.b32.xlu0 %v533, 111
    %v656 = vpop.permute.xlu0 %655
    %657 = vrot.lane.b32.xlu0 %v534, 111
    %v658 = vpop.permute.xlu0 %657
    %659 = vrot.lane.b32.xlu0 %v535, 111
    %v660 = vpop.permute.xlu0 %659
    %v661 = vsel %vm318, %v658, %v660
    %v662 = vsel %vm318, %v656, %v658
    %v663 = vsel %vm318, %v654, %v656
    %v664 = vsel %vm318, %v660, %v654
    %v665 = vmul.f32 %v663, %v326
    %v666 = vmul.f32 %v662, %v330
    %v667 = vmul.f32 %v661, %v334
    %v668 = vmul.f32 %v664, %v338
    %v670 = vsel %vm343, %v536, 0
    %672 = vmatprep.subr.mxu0 %v550
    %673 = vmatpush1.msra.mxu0 %v549
    %674 = vmatprep.subr.mxu0 %v566
    %675 = vmatpush1.msra.mxu0 %v565
    %676 = vmatprep.subr.mxu0 %v582
    %677 = vmatpush1.msra.mxu0 %v581
    %678 = vmatprep.subr.mxu0 %v598
    %679 = vmatpush1.msra.mxu0 %v597
    %680 = vmatprep.subr.mxu0 %v602
    %681 = vmatpush1.msra.mxu0 %v601
    %682 = vmatprep.subr.mxu0 %v618
    %683 = vmatpush1.msra.mxu0 %v617
    %684 = vmatprep.subr.mxu0 %v634
    %685 = vmatpush1.msra.mxu0 %v633
    %686 = vmatprep.subr.mxu0 %v650
    %687 = vmatpush1.msra.mxu0 %v649
    %688 = vmatprep.subr.mxu0 %v666
    %689 = vmatpush1.msra.mxu0 %v665
    %690 = vmatprep.subr.mxu0 0.0
    %691 = vmatpush1.msra.mxu0 0.0
    %692 = vmatprep.subr.mxu0 0.0
    %693 = vmatpush1.msra.mxu0 0.0
    %694 = vmatprep.subr.mxu0 0.0
    %695 = vmatpush1.msra.mxu0 0.0
    %696 = vmatprep.subr.mxu0 0.0
    %697 = vmatpush1.msra.mxu0 0.0
    %698 = vmatprep.subr.mxu0 0.0
    %699 = vmatpush1.msra.mxu0 0.0
    %700 = vmatprep.subr.mxu0 0.0
    %701 = vmatpush1.msra.mxu0 0.0
    %702 = vmatprep.subr.mxu0 0.0
    %703 = vmatpush1.msra.mxu0 0.0
    %704 = vmatprep.subr.mxu0 0.0
    %705 = vmatpush1.msra.mxu0 0.0
    %706 = vmatprep.subr.mxu0 0.0
    %707 = vmatpush1.msra.mxu0 0.0
    %708 = vmatprep.subr.mxu0 0.0
    %709 = vmatpush1.msra.mxu0 0.0
    %710 = vmatprep.subr.mxu0 0.0
    %711 = vmatpush1.msra.mxu0 0.0
    %712 = vmatprep.subr.mxu0 0.0
    %713 = vmatpush1.msra.mxu0 0.0
    %714 = vmatprep.subr.mxu0 0.0
    %715 = vmatpush1.msra.mxu0 0.0
    %716 = vmatprep.subr.mxu0 0.0
    %717 = vmatpush1.msra.mxu0 0.0
    %718 = vmatprep.subr.mxu0 0.0
    %719 = vmatpush1.msra.mxu0 0.0
    %720 = vmatprep.subr.mxu0 0.0
    %721 = vmatpush1.msra.mxu0 0.0
    %722 = vmatprep.subr.mxu0 0.0
    %723 = vmatpush1.msra.mxu0 0.0
    %724 = vmatprep.subr.mxu0 0.0
    %725 = vmatpush1.msra.mxu0 0.0
    %726 = vmatprep.subr.mxu0 0.0
    %727 = vmatpush1.msra.mxu0 0.0
    %728 = vmatprep.subr.mxu0 0.0
    %729 = vmatpush1.msra.mxu0 0.0
    %730 = vmatprep.subr.mxu0 0.0
    %731 = vmatpush1.msra.mxu0 0.0
    %732 = vmatprep.subr.mxu0 0.0
    %733 = vmatpush1.msra.mxu0 0.0
    %734 = vmatprep.subr.mxu0 0.0
    %735 = vmatpush1.msra.mxu0 0.0
    %736 = vmatprep.mubr.f32.mxu0 0.0
    %737 = vmatmul.mubr.f32.gmra.mrb[0].mxu0 %v670
    %v738 = vpop.f32.mrb[0].mxu0
    %v739 = vadd.f32 0.0, %v738
    %v740 = vpop.f32.mrb[0].mxu0
    %v741 = vadd.f32 0.0, %v740
    %742 = vdwg.mxu0
    %743 = vmatprep.subr.mxu0 %v552
    %744 = vmatpush1.msra.mxu0 %v551
    %745 = vmatprep.subr.mxu0 %v568
    %746 = vmatpush1.msra.mxu0 %v567
    %747 = vmatprep.subr.mxu0 %v584
    %748 = vmatpush1.msra.mxu0 %v583
    %749 = vmatprep.subr.mxu0 %v600
    %750 = vmatpush1.msra.mxu0 %v599
    %751 = vmatprep.subr.mxu0 %v604
    %752 = vmatpush1.msra.mxu0 %v603
    %753 = vmatprep.subr.mxu0 %v620
    %754 = vmatpush1.msra.mxu0 %v619
    %755 = vmatprep.subr.mxu0 %v636
    %756 = vmatpush1.msra.mxu0 %v635
    %757 = vmatprep.subr.mxu0 %v652
    %758 = vmatpush1.msra.mxu0 %v651
    %759 = vmatprep.subr.mxu0 %v668
    %760 = vmatpush1.msra.mxu0 %v667
    %761 = vmatprep.subr.mxu0 0.0
    %762 = vmatpush1.msra.mxu0 0.0
    %763 = vmatprep.subr.mxu0 0.0
    %764 = vmatpush1.msra.mxu0 0.0
    %765 = vmatprep.subr.mxu0 0.0
    %766 = vmatpush1.msra.mxu0 0.0
    %767 = vmatprep.subr.mxu0 0.0
    %768 = vmatpush1.msra.mxu0 0.0
    %769 = vmatprep.subr.mxu0 0.0
    %770 = vmatpush1.msra.mxu0 0.0
    %771 = vmatprep.subr.mxu0 0.0
    %772 = vmatpush1.msra.mxu0 0.0
    %773 = vmatprep.subr.mxu0 0.0
    %774 = vmatpush1.msra.mxu0 0.0
    %775 = vmatprep.subr.mxu0 0.0
    %776 = vmatpush1.msra.mxu0 0.0
    %777 = vmatprep.subr.mxu0 0.0
    %778 = vmatpush1.msra.mxu0 0.0
    %779 = vmatprep.subr.mxu0 0.0
    %780 = vmatpush1.msra.mxu0 0.0
    %781 = vmatprep.subr.mxu0 0.0
    %782 = vmatpush1.msra.mxu0 0.0
    %783 = vmatprep.subr.mxu0 0.0
    %784 = vmatpush1.msra.mxu0 0.0
    %785 = vmatprep.subr.mxu0 0.0
    %786 = vmatpush1.msra.mxu0 0.0
    %787 = vmatprep.subr.mxu0 0.0
    %788 = vmatpush1.msra.mxu0 0.0
    %789 = vmatprep.subr.mxu0 0.0
    %790 = vmatpush1.msra.mxu0 0.0
    %791 = vmatprep.subr.mxu0 0.0
    %792 = vmatpush1.msra.mxu0 0.0
    %793 = vmatprep.subr.mxu0 0.0
    %794 = vmatpush1.msra.mxu0 0.0
    %795 = vmatprep.subr.mxu0 0.0
    %796 = vmatpush1.msra.mxu0 0.0
    %797 = vmatprep.subr.mxu0 0.0
    %798 = vmatpush1.msra.mxu0 0.0
    %799 = vmatprep.subr.mxu0 0.0
    %800 = vmatpush1.msra.mxu0 0.0
    %801 = vmatprep.subr.mxu0 0.0
    %802 = vmatpush1.msra.mxu0 0.0
    %803 = vmatprep.subr.mxu0 0.0
    %804 = vmatpush1.msra.mxu0 0.0
    %805 = vmatprep.subr.mxu0 0.0
    %806 = vmatpush1.msra.mxu0 0.0
    %807 = vmatprep.mubr.f32.mxu0 0.0
    %808 = vmatmul.mubr.f32.gmra.mrb[0].mxu0 %v670
    %v809 = vpop.f32.mrb[0].mxu0
    %v810 = vadd.f32 0.0, %v809
    %v811 = vpop.f32.mrb[0].mxu0
    %v812 = vadd.f32 0.0, %v811
    %813 = vdwg.mxu0
    %v814 = vld [vmem:[%s6] sm:$0xff]
    %v815 = vld [vmem:[%s7] sm:$0xff]
    %v816 = vadd.f32 %v739, %v741
    %v817 = vadd.f32 %v816, %v810
    %v818 = vadd.f32 %v817, %v812
    %819 = vadd.xlane.f32.xlu0 %v818
    %v820 = vpop.xlane.xlu0 %819
    %v821 = vmul.f32 %v739, %v739
    %v822 = vmul.f32 %v741, %v741
    %v823 = vmul.f32 %v810, %v810
    %v824 = vmul.f32 %v812, %v812
    %v825 = vadd.f32 %v821, %v822
    %v826 = vadd.f32 %v825, %v823
    %v827 = vadd.f32 %v826, %v824
    %828 = vadd.xlane.f32.xlu0 %v827
    %v829 = vpop.xlane.xlu0 %828
    %v830 = vmul.f32 %v820, 0.001953125
    %v831 = vmul.f32 %v829, 0.001953125
    %v832 = vmul.f32 %v830, %v830
    %v833 = vsub.f32 %v831, %v832
    %v834 = vadd.f32 %v833, 1e-05
    %v835 = vrsqrt.pop %v834
    %v836 = vmul.f32 %v814, %v835
    %v837 = vmul.f32 %v830, %v836
    %v838 = vsub.f32 %v815, %v837
    %840 = vset.pattern.permute.xlu0 0
    %841 = vperm.xlu0 %840, %v836
    %v842 = vpop.permute.xlu0 %841
    %v844 = vmul.f32 %v739, %v842
    %v845 = vmul.f32 %v741, %v842
    %v846 = vmul.f32 %v810, %v842
    %v847 = vmul.f32 %v812, %v842
    %849 = vset.pattern.permute.xlu0 0
    %850 = vperm.xlu0 %849, %v838
    %v851 = vpop.permute.xlu0 %850
    %v853 = vadd.f32 %v844, %v851
    %v854 = vadd.f32 %v845, %v851
    %v855 = vadd.f32 %v846, %v851
    %v856 = vadd.f32 %v847, %v851
    %v857 = vadd.f32 %v853, %v44
    %v858 = vadd.f32 %v854, %v45
    %v859 = vadd.f32 %v855, %v46
    %v860 = vadd.f32 %v856, %v47
    %v861 = vmax.f32 %v857, 0.0
    %v862 = vmax.f32 %v858, 0.0
    %v863 = vmax.f32 %v859, 0.0
    %v864 = vmax.f32 %v860, 0.0
    %865 = vst [vmem:[#allocation5] sm:$0xff] %v861
    %866 = vst [vmem:[#allocation5 + $0x8] sm:$0xff] %v862
    %867 = vst [vmem:[#allocation5 + $0x10] sm:$0xff] %v863
    %868 = vst [vmem:[#allocation5 + $0x18] sm:$0xff] %v864
    // Predicated region
    $region38: #{tpu_custom_call.1} parent=1 // pred_check
      _
    $region39: #{tpu_custom_call.1} parent=1 // pred_check_branch
      %870 = sbr.rel (0) target = $region41
    $region40: #{tpu_custom_call.1} parent=1 // pred_region
      %s872 = ssub.s32 512, 512
      %873 = vsyncadd [#allocation4], %s872
      %s875 = sshll.u32 [#allocation5], 4
      %s876 = int_to_ptr.vmem [resolvable:$true] %s875
      %878 = dma.vmem_to_hbm [thread:$0]  %s876, 512, %s8, [#allocation4]
    $region41: #{tpu_custom_call.1} parent=1 // pred_fallthru
      _
    // Predicated region
    $region42: #{tpu_custom_call.1} parent=1 // pred_check
      _
    $region43: #{tpu_custom_call.1} parent=1 // pred_check_branch
      %880 = sbr.rel (0) target = $region45
    $region44: #{tpu_custom_call.1} parent=1 // pred_region
      %881 = dma.done [#allocation4], 512
    $region45: #{tpu_custom_call.1} parent=1 // pred_fallthru
      _
    %882 = vsyncpa [#allocation3], 1
    %883 = vsyncpa [#allocation4], 1

</llo_original>
